<compile_context>
chip_gen: v7x
topology: tpu7x:2x2x1
jax: 0.10.0
libtpu: 0.0.40
codegen_flags: <defaults>
</compile_context>

<pallas_src>
import functools

import jax
import jax.numpy as jnp
from jax.experimental import pallas as pl
from jax.experimental.pallas import tpu as pltpu


_TB_MAX = 1024  # max batch-tile rows per grid step


def _make_critic_kernel(num_hidden):
    """Kernel for a critic MLP with `num_hidden` >= 1 hidden layers.

    Ref order: (state, action, W0_s, W0_a, b0, W1, b1, ..., W_{nh-1}, b_{nh-1}, Wout_T, bout, out)
    """

    def kernel(*refs):
        state_ref, action_ref = refs[0], refs[1]
        out_ref = refs[-1]
        p = refs[2:-1]

        # First hidden layer: fused concat via split matmul.
        w0s = p[0][...].astype(jnp.float32)   # (S, H0)
        w0a = p[1][...].astype(jnp.float32)   # (A, H0)
        b0 = p[2][...].astype(jnp.float32)    # (1, H0)
        x = (
            jnp.dot(state_ref[...].astype(jnp.float32), w0s,
                    preferred_element_type=jnp.float32)
            + jnp.dot(action_ref[...].astype(jnp.float32), w0a,
                      preferred_element_type=jnp.float32)
            + b0
        )
        x = jnp.maximum(x, 0.0)

        # Remaining hidden layers.
        for i in range(1, num_hidden):
            w = p[3 + 2 * (i - 1)][...].astype(jnp.float32)
            b = p[4 + 2 * (i - 1)][...].astype(jnp.float32)
            x = jnp.maximum(
                jnp.dot(x, w, preferred_element_type=jnp.float32) + b, 0.0
            )

        # Output layer (N=1): VPU multiply + lane reduction instead of a 1-column MXU matmul.
        wo_t = p[-2][...].astype(jnp.float32)  # (1, H_last)
        bo = p[-1][...].astype(jnp.float32)    # (1, 1)
        out_ref[...] = (
            jnp.sum(x * wo_t, axis=-1, keepdims=True) + bo
        ).astype(out_ref.dtype)

    return kernel


def init_critic_params(key, state_size, action_size, hidden_layers_size):
    """Parameter init mirroring the PyTorch module's shapes.

    Returns a flat list: [W0, b0, W1, b1, ..., W_out, b_out] with
    W_i shaped (in_features, out_features) and b_i shaped (1, out_features).
    """
    sizes = [state_size + action_size] + list(hidden_layers_size) + [1]
    params = []
    for i in range(len(sizes) - 1):
        fan_in, fan_out = sizes[i], sizes[i + 1]
        key, kw, kb = jax.random.split(key, 3)
        limit = 1.0 / jnp.sqrt(jnp.float32(fan_in))  # PyTorch Linear default range
        w = jax.random.uniform(kw, (fan_in, fan_out), jnp.float32, -limit, limit)
        b = jax.random.uniform(kb, (1, fan_out), jnp.float32, -limit, limit)
        params += [w, b]
    return params


@functools.partial(jax.jit, static_argnames=("num_hidden",))
def _critic_pallas(state, action, params, num_hidden):
    batch, S = state.shape
    A = action.shape[1]

    # --- one-time (tiny) param prep: split W0 at the state/action boundary, transpose W_out ---
    w0, b0 = params[0], params[1]
    w0s, w0a = w0[:S, :], w0[S:, :]
    mid = tuple(params[2:2 * num_hidden])            # W1, b1, ..., W_{nh-1}, b_{nh-1}
    wo, bo = params[2 * num_hidden], params[2 * num_hidden + 1]
    kparams = (w0s, w0a, b0) + mid + (wo.T, bo)      # wo.T -> (1, H_last)

    # --- batch tiling: full-batch block for small batches, 8-aligned tiles (with pad) otherwise ---
    if batch <= _TB_MAX:
        tb = batch
        padded = batch
    else:
        tb = _TB_MAX  # multiple of 8 (sublane requirement for non-full blocks)
        padded = pl.cdiv(batch, tb) * tb
    if padded != batch:
        state = jnp.pad(state, ((0, padded - batch), (0, 0)))
        action = jnp.pad(action, ((0, padded - batch), (0, 0)))
    grid = (padded // tb,)

    # --- cost hint for the XLA scheduler ---
    sizes = [S + A] + [params[2 * i].shape[1] for i in range(num_hidden)] + [1]
    flops = 2 * batch * sum(sizes[i] * sizes[i + 1] for i in range(len(sizes) - 1))
    bytes_accessed = (
        state.size * state.dtype.itemsize
        + action.size * action.dtype.itemsize
        + batch * 4
        + sum(p.size * p.dtype.itemsize for p in kparams)
    )
    cost = pl.CostEstimate(
        flops=int(flops), transcendentals=0, bytes_accessed=int(bytes_accessed)
    )

    in_specs = [
        pl.BlockSpec((tb, S), lambda i: (i, 0)),
        pl.BlockSpec((tb, A), lambda i: (i, 0)),
    ] + [
        # Weights/biases: full-array block, constant index_map -> stay VMEM-resident across steps.
        pl.BlockSpec(p.shape, lambda i, nd=p.ndim: (0,) * nd)
        for p in kparams
    ]
    out_spec = pl.BlockSpec((tb, 1), lambda i: (i, 0))

    out = pl.pallas_call(
        _make_critic_kernel(num_hidden),
        out_shape=jax.ShapeDtypeStruct((padded, 1), jnp.float32),
        grid=grid,
        in_specs=in_specs,
        out_specs=out_spec,
        compiler_params=pltpu.CompilerParams(
            dimension_semantics=("parallel",),
        ),
        cost_estimate=cost,
    )(state, action, *kparams)

    if padded != batch:
        out = out[:batch]
    return out


def critic_forward(state, action, params):
    """Equivalent of CriticNetwork.forward(state, action)."""
    num_hidden = (len(params) - 2) // 2
    return _critic_pallas(
        state.astype(jnp.float32), action.astype(jnp.float32), tuple(params), num_hidden
    )


def critic_forward_ref(state, action, params):
    """Pure-JAX reference for correctness checking."""
    x = jnp.concatenate([state, action], axis=-1).astype(jnp.float32)
    num_hidden = (len(params) - 2) // 2
    for i in range(num_hidden):
        x = jnp.maximum(x @ params[2 * i] + params[2 * i + 1], 0.0)
    return x @ params[2 * num_hidden] + params[2 * num_hidden + 1]


# TODO(synk): CriticNetwork.save/load are torch file-I/O utilities with no kernel equivalent.

if __name__ == "__main__":
    # Small, module-consistent shapes.
    batch = 8
    state_size = 12
    action_size = 4
    hidden_layers_size = [32, 32]

    key = jax.random.PRNGKey(0)
    k_s, k_a, k_p = jax.random.split(key, 3)
    state = jax.random.normal(k_s, (batch, state_size), jnp.float32)
    action = jax.random.normal(k_a, (batch, action_size), jnp.float32)

    params = init_critic_params(k_p, state_size, action_size, hidden_layers_size)

    out = critic_forward(state, action, params)
    jax.block_until_ready(out)

    ref = critic_forward_ref(state, action, params)
    assert out.shape == (batch, 1), out.shape
    assert jnp.allclose(out, ref, atol=1e-4, rtol=1e-4), (out, ref)

    print("KERNEL_OK")
</pallas_src>

<mosaic_0001>
module attributes {stable_mosaic.version = 11 : i64} {
  func.func @kernel(%arg0: i32, %arg1: memref<8x12xf32, #tpu.memory_space<vmem>>, %arg2: memref<8x4xf32, #tpu.memory_space<vmem>>, %arg3: memref<12x32xf32, #tpu.memory_space<vmem>>, %arg4: memref<4x32xf32, #tpu.memory_space<vmem>>, %arg5: memref<1x32xf32, #tpu.memory_space<vmem>>, %arg6: memref<32x32xf32, #tpu.memory_space<vmem>>, %arg7: memref<1x32xf32, #tpu.memory_space<vmem>>, %arg8: memref<1x32xf32, #tpu.memory_space<vmem>>, %arg9: memref<1x1xf32, #tpu.memory_space<vmem>>, %arg10: memref<8x1xf32, #tpu.memory_space<vmem>>) attributes {dimension_semantics = [#tpu.dimension_semantics<parallel>], iteration_bounds = array<i64: 1>, scalar_prefetch = 0 : i64, scratch_operands = 0 : i64, tpu.core_type = #tpu.core_type<tc>, window_params = [{transform_indices = @transform_0, window_bounds = array<i64: 8, 12>}, {transform_indices = @transform_1, window_bounds = array<i64: 8, 4>}, {pipeline_mode = #tpu.pipeline_mode<synchronous>, transform_indices = @transform_2, window_bounds = array<i64: 12, 32>}, {pipeline_mode = #tpu.pipeline_mode<synchronous>, transform_indices = @transform_3, window_bounds = array<i64: 4, 32>}, {pipeline_mode = #tpu.pipeline_mode<synchronous>, transform_indices = @transform_4, window_bounds = array<i64: 1, 32>}, {pipeline_mode = #tpu.pipeline_mode<synchronous>, transform_indices = @transform_5, window_bounds = array<i64: 32, 32>}, {pipeline_mode = #tpu.pipeline_mode<synchronous>, transform_indices = @transform_6, window_bounds = array<i64: 1, 32>}, {pipeline_mode = #tpu.pipeline_mode<synchronous>, transform_indices = @transform_7, window_bounds = array<i64: 1, 32>}, {pipeline_mode = #tpu.pipeline_mode<synchronous>, transform_indices = @transform_8, window_bounds = array<i64: 1, 1>}, {transform_indices = @transform_9, window_bounds = array<i64: 8, 1>}]} {
    %c0 = arith.constant 0 : index
    %c0_0 = arith.constant 0 : index
    %0 = vector.load %arg3[%c0, %c0_0] : memref<12x32xf32, #tpu.memory_space<vmem>>, vector<12x32xf32>
    %c0_1 = arith.constant 0 : index
    %c0_2 = arith.constant 0 : index
    %1 = vector.load %arg4[%c0_1, %c0_2] : memref<4x32xf32, #tpu.memory_space<vmem>>, vector<4x32xf32>
    %c0_3 = arith.constant 0 : index
    %c0_4 = arith.constant 0 : index
    %2 = vector.load %arg5[%c0_3, %c0_4] : memref<1x32xf32, #tpu.memory_space<vmem>>, vector<1x32xf32>
    %c0_5 = arith.constant 0 : index
    %c0_6 = arith.constant 0 : index
    %3 = vector.load %arg1[%c0_5, %c0_6] : memref<8x12xf32, #tpu.memory_space<vmem>>, vector<8x12xf32>
    %cst = arith.constant dense<0.000000e+00> : vector<8x32xf32>
    %4 = tpu.matmul %3, %0, %cst {dimension_numbers = #tpu.dot_dimension_numbers<[1], [0], [0], [1], [0, 0, 1, 1], [], []>} : vector<8x12xf32>, vector<12x32xf32>, vector<8x32xf32> -> vector<8x32xf32>
    %c0_7 = arith.constant 0 : index
    %c0_8 = arith.constant 0 : index
    %5 = vector.load %arg2[%c0_7, %c0_8] : memref<8x4xf32, #tpu.memory_space<vmem>>, vector<8x4xf32>
    %cst_9 = arith.constant dense<0.000000e+00> : vector<8x32xf32>
    %6 = tpu.matmul %5, %1, %cst_9 {dimension_numbers = #tpu.dot_dimension_numbers<[1], [0], [0], [1], [0, 0, 1, 1], [], []>} : vector<8x4xf32>, vector<4x32xf32>, vector<8x32xf32> -> vector<8x32xf32>
    %7 = arith.addf %4, %6 : vector<8x32xf32>
    %8 = vector.broadcast %2 : vector<1x32xf32> to vector<8x32xf32>
    %9 = arith.addf %7, %8 : vector<8x32xf32>
    %cst_10 = arith.constant 0.000000e+00 : f32
    %10 = vector.broadcast %cst_10 : f32 to vector<8x32xf32>
    %11 = arith.maximumf %9, %10 : vector<8x32xf32>
    %c0_11 = arith.constant 0 : index
    %c0_12 = arith.constant 0 : index
    %12 = vector.load %arg6[%c0_11, %c0_12] : memref<32x32xf32, #tpu.memory_space<vmem>>, vector<32x32xf32>
    %c0_13 = arith.constant 0 : index
    %c0_14 = arith.constant 0 : index
    %13 = vector.load %arg7[%c0_13, %c0_14] : memref<1x32xf32, #tpu.memory_space<vmem>>, vector<1x32xf32>
    %cst_15 = arith.constant dense<0.000000e+00> : vector<8x32xf32>
    %14 = tpu.matmul %11, %12, %cst_15 {dimension_numbers = #tpu.dot_dimension_numbers<[1], [0], [0], [1], [0, 0, 1, 1], [], []>} : vector<8x32xf32>, vector<32x32xf32>, vector<8x32xf32> -> vector<8x32xf32>
    %15 = vector.broadcast %13 : vector<1x32xf32> to vector<8x32xf32>
    %16 = arith.addf %14, %15 : vector<8x32xf32>
    %cst_16 = arith.constant 0.000000e+00 : f32
    %17 = vector.broadcast %cst_16 : f32 to vector<8x32xf32>
    %18 = arith.maximumf %16, %17 : vector<8x32xf32>
    %c0_17 = arith.constant 0 : index
    %c0_18 = arith.constant 0 : index
    %19 = vector.load %arg8[%c0_17, %c0_18] : memref<1x32xf32, #tpu.memory_space<vmem>>, vector<1x32xf32>
    %c0_19 = arith.constant 0 : index
    %c0_20 = arith.constant 0 : index
    %20 = vector.load %arg9[%c0_19, %c0_20] : memref<1x1xf32, #tpu.memory_space<vmem>>, vector<1x1xf32>
    %21 = vector.broadcast %19 : vector<1x32xf32> to vector<8x32xf32>
    %22 = arith.mulf %18, %21 : vector<8x32xf32>
    %cst_21 = arith.constant dense<0.000000e+00> : vector<8xf32>
    %23 = vector.multi_reduction <add>, %22, %cst_21 [1] : vector<8x32xf32> to vector<8xf32>
    %24 = vector.shape_cast %23 : vector<8xf32> to vector<8x1xf32>
    %25 = vector.broadcast %20 : vector<1x1xf32> to vector<8x1xf32>
    %26 = arith.addf %24, %25 : vector<8x1xf32>
    %c0_22 = arith.constant 0 : index
    %c0_23 = arith.constant 0 : index
    %27 = vector.load %arg10[%c0_22, %c0_23] : memref<8x1xf32, #tpu.memory_space<vmem>>, vector<8x1xf32>
    tpu.vector_store %arg10[%c0_22, %c0_23], %26 {strides = array<i32>} : memref<8x1xf32, #tpu.memory_space<vmem>>, vector<8x1xf32>,
    return
  }
  func.func @transform_0(%arg0: i32) -> (i32, i32) {
    %c0_i32 = arith.constant 0 : i32
    %c0_i32_0 = arith.constant 0 : i32
    return %arg0, %c0_i32 : i32, i32
  }
  func.func @transform_1(%arg0: i32) -> (i32, i32) {
    %c0_i32 = arith.constant 0 : i32
    %c0_i32_0 = arith.constant 0 : i32
    return %arg0, %c0_i32 : i32, i32
  }
  func.func @transform_2(%arg0: i32) -> (i32, i32) {
    %c0_i32 = arith.constant 0 : i32
    %c0_i32_0 = arith.constant 0 : i32
    %c0_i32_1 = arith.constant 0 : i32
    return %c0_i32, %c0_i32_0 : i32, i32
  }
  func.func @transform_3(%arg0: i32) -> (i32, i32) {
    %c0_i32 = arith.constant 0 : i32
    %c0_i32_0 = arith.constant 0 : i32
    %c0_i32_1 = arith.constant 0 : i32
    return %c0_i32, %c0_i32_0 : i32, i32
  }
  func.func @transform_4(%arg0: i32) -> (i32, i32) {
    %c0_i32 = arith.constant 0 : i32
    %c0_i32_0 = arith.constant 0 : i32
    %c0_i32_1 = arith.constant 0 : i32
    return %c0_i32, %c0_i32_0 : i32, i32
  }
  func.func @transform_5(%arg0: i32) -> (i32, i32) {
    %c0_i32 = arith.constant 0 : i32
    %c0_i32_0 = arith.constant 0 : i32
    %c0_i32_1 = arith.constant 0 : i32
    return %c0_i32, %c0_i32_0 : i32, i32
  }
  func.func @transform_6(%arg0: i32) -> (i32, i32) {
    %c0_i32 = arith.constant 0 : i32
    %c0_i32_0 = arith.constant 0 : i32
    %c0_i32_1 = arith.constant 0 : i32
    return %c0_i32, %c0_i32_0 : i32, i32
  }
  func.func @transform_7(%arg0: i32) -> (i32, i32) {
    %c0_i32 = arith.constant 0 : i32
    %c0_i32_0 = arith.constant 0 : i32
    %c0_i32_1 = arith.constant 0 : i32
    return %c0_i32, %c0_i32_0 : i32, i32
  }
  func.func @transform_8(%arg0: i32) -> (i32, i32) {
    %c0_i32 = arith.constant 0 : i32
    %c0_i32_0 = arith.constant 0 : i32
    %c0_i32_1 = arith.constant 0 : i32
    return %c0_i32, %c0_i32_0 : i32, i32
  }
  func.func @transform_9(%arg0: i32) -> (i32, i32) {
    %c0_i32 = arith.constant 0 : i32
    %c0_i32_0 = arith.constant 0 : i32
    return %arg0, %c0_i32 : i32, i32
  }
}

</mosaic_0001>

<llo_original>
// kernel: _critic_pallas.1
$region0: #{_critic_pallas.1}
  #allocation0 [shape = 'u32[]', space=smem, size = 0x4, offset = 0x4, fixed_abs, tag = 'smem constant byte address 0x4 - core index']
  #allocation1 [shape = 'u32[144,128]{1,0:T(1,128)}', space=vmem, size = 0x12000, scoped, tag = 'internal scratch']
  #allocation2 [shape = 'f32[1,1]{1,0:T(1,128)S(1)}', space=vmem, size = 0x200, scoped, tag = 'scoped memory for _critic_pallas.1']
  %s0 = inlined_call_operand.hbm [shape: f32[8,12], index: 0, kind: input, shape index: {}]
  %s1 = inlined_call_operand.vmem [shape: f32[8,4], index: 1, kind: input, shape index: {}]
  %s2 = inlined_call_operand.vmem [shape: f32[12,32], index: 2, kind: input, shape index: {}]
  %s3 = inlined_call_operand.vmem [shape: f32[4,32], index: 3, kind: input, shape index: {}]
  %s4 = inlined_call_operand.vmem [shape: f32[1,32], index: 4, kind: input, shape index: {}]
  %s5 = inlined_call_operand.vmem [shape: f32[32,32], index: 5, kind: input, shape index: {}]
  %s6 = inlined_call_operand.vmem [shape: f32[1,32], index: 6, kind: input, shape index: {}]
  %s7 = inlined_call_operand.hbm [shape: f32[1,32], index: 7, kind: input, shape index: {}]
  %s8 = inlined_call_operand.<no memory space> [shape: f32[1,1], index: 8, kind: input, shape index: {}]
  %s9 = inlined_call_operand.vmem [shape: f32[8,1], index: 9, kind: output, shape index: {}]
  %s10 = sld [smem:[#allocation0]]
  $region54: #{_critic_pallas.1} parent=0
    _
  %s12 = ssub.s32 1, %s10
  %s13 = scalar_select 0, %s12, %s10
  %v14 = vstv %s8
  %15 = vst [vmem:[#allocation2] sm:$0x1] %v14
  $region1: #{_critic_pallas.1} parent=0
    #allocation3 [shape = 'u8[4096]{0}', space=vmem, size = 0x1000, scoped, tag = 'input window, operand 0, single buffered']
    #allocation4 [shape = 's32[1]{0}', space=sflag, size = 0x4, scoped, tag = 'scoped memory for _critic_pallas.1']
    #allocation5 [shape = 'u8[512]{0}', space=vmem, size = 0x400, scoped, tag = 'input window, operand 7, single buffered']
    #allocation6 [shape = 's32[1]{0}', space=sflag, size = 0x4, scoped, tag = 'scoped memory for _critic_pallas.1']
    %16 = vsyncpa [#allocation4], 0
    %17 = vsyncpa [#allocation6], 0
    // Predicated region
    $region2: #{_critic_pallas.1} parent=1 // pred_check
      _
    $region3: #{_critic_pallas.1} parent=1 // pred_check_branch
      %19 = sbr.rel (0) target = $region5
    $region4: #{_critic_pallas.1} parent=1 // pred_region
      %s21 = ssub.s32 128, 128
      %22 = vsyncadd [#allocation4], %s21
      %s24 = sshll.u32 [#allocation3], 4
      %s25 = int_to_ptr.vmem [resolvable:$true] %s24
      %27 = dma.hbm_to_vmem [thread:$0]  %s0, 128, %s25, [#allocation4]
    $region5: #{_critic_pallas.1} parent=1 // pred_fallthru
      _
    // Predicated region
    $region6: #{_critic_pallas.1} parent=1 // pred_check
      _
    $region7: #{_critic_pallas.1} parent=1 // pred_check_branch
      %29 = sbr.rel (0) target = $region9
    $region8: #{_critic_pallas.1} parent=1 // pred_region
      _
    $region9: #{_critic_pallas.1} parent=1 // pred_fallthru
      _
    // Predicated region
    $region10: #{_critic_pallas.1} parent=1 // pred_check
      _
    $region11: #{_critic_pallas.1} parent=1 // pred_check_branch
      %31 = sbr.rel (0) target = $region13
    $region12: #{_critic_pallas.1} parent=1 // pred_region
      _
    $region13: #{_critic_pallas.1} parent=1 // pred_fallthru
      _
    // Predicated region
    $region14: #{_critic_pallas.1} parent=1 // pred_check
      _
    $region15: #{_critic_pallas.1} parent=1 // pred_check_branch
      %33 = sbr.rel (0) target = $region17
    $region16: #{_critic_pallas.1} parent=1 // pred_region
      _
    $region17: #{_critic_pallas.1} parent=1 // pred_fallthru
      _
    // Predicated region
    $region18: #{_critic_pallas.1} parent=1 // pred_check
      _
    $region19: #{_critic_pallas.1} parent=1 // pred_check_branch
      %35 = sbr.rel (0) target = $region21
    $region20: #{_critic_pallas.1} parent=1 // pred_region
      _
    $region21: #{_critic_pallas.1} parent=1 // pred_fallthru
      _
    // Predicated region
    $region22: #{_critic_pallas.1} parent=1 // pred_check
      _
    $region23: #{_critic_pallas.1} parent=1 // pred_check_branch
      %37 = sbr.rel (0) target = $region25
    $region24: #{_critic_pallas.1} parent=1 // pred_region
      _
    $region25: #{_critic_pallas.1} parent=1 // pred_fallthru
      _
    // Predicated region
    $region26: #{_critic_pallas.1} parent=1 // pred_check
      _
    $region27: #{_critic_pallas.1} parent=1 // pred_check_branch
      %39 = sbr.rel (0) target = $region29
    $region28: #{_critic_pallas.1} parent=1 // pred_region
      _
    $region29: #{_critic_pallas.1} parent=1 // pred_fallthru
      _
    // Predicated region
    $region30: #{_critic_pallas.1} parent=1 // pred_check
      _
    $region31: #{_critic_pallas.1} parent=1 // pred_check_branch
      %41 = sbr.rel (0) target = $region33
    $region32: #{_critic_pallas.1} parent=1 // pred_region
      %s43 = ssub.s32 16, 16
      %44 = vsyncadd [#allocation6], %s43
      %s46 = sshll.u32 [#allocation5], 4
      %s47 = int_to_ptr.vmem [resolvable:$true] %s46
      %49 = dma.hbm_to_vmem [thread:$0]  %s7, 16, %s47, [#allocation6]
    $region33: #{_critic_pallas.1} parent=1 // pred_fallthru
      _
    // Predicated region
    $region34: #{_critic_pallas.1} parent=1 // pred_check
      _
    $region35: #{_critic_pallas.1} parent=1 // pred_check_branch
      %51 = sbr.rel (0) target = $region37
    $region36: #{_critic_pallas.1} parent=1 // pred_region
      _
    $region37: #{_critic_pallas.1} parent=1 // pred_fallthru
      _
    // Predicated region
    $region38: #{_critic_pallas.1} parent=1 // pred_check
      _
    $region39: #{_critic_pallas.1} parent=1 // pred_check_branch
      %53 = sbr.rel (0) target = $region41
    $region40: #{_critic_pallas.1} parent=1 // pred_region
      %54 = dma.done [#allocation4], 128
    $region41: #{_critic_pallas.1} parent=1 // pred_fallthru
      _
    // Predicated region
    $region42: #{_critic_pallas.1} parent=1 // pred_check
      _
    $region43: #{_critic_pallas.1} parent=1 // pred_check_branch
      %56 = sbr.rel (0) target = $region45
    $region44: #{_critic_pallas.1} parent=1 // pred_region
      %57 = dma.done [#allocation6], 16
    $region45: #{_critic_pallas.1} parent=1 // pred_fallthru
      _
    %v58 = vld [vmem:[%s2] sm:$0xff]
    %v59 = vld [vmem:[%s2 + $0x8] sm:$0xf]
    %v60 = vld [vmem:[%s3] sm:$0xf]
    %v61 = vld [vmem:[%s4] sm:$0x1]
    %v62 = vld [vmem:[#allocation3] sm:$0xff]
    %v63 = vld [vmem:[%s1] sm:$0xff]
    %vm64 = vcmask 31744
    %v66 = vsel %vm64, %v63, 0
    %vm68 = vcmask 1043456
    %v70 = vsel %vm68, %v60, 0
    %72 = vmatprep.subr.mxu0 0.0
    %73 = vmatpush1.msra.mxu0 %v70
    %74 = vmatprep.subr.mxu0 0.0
    %75 = vmatpush1.msra.mxu0 0.0
    %76 = vmatprep.subr.mxu0 0.0
    %77 = vmatpush1.msra.mxu0 0.0
    %78 = vmatprep.subr.mxu0 0.0
    %79 = vmatpush1.msra.mxu0 0.0
    %80 = vmatprep.subr.mxu0 0.0
    %81 = vmatpush1.msra.mxu0 0.0
    %82 = vmatprep.subr.mxu0 0.0
    %83 = vmatpush1.msra.mxu0 0.0
    %84 = vmatprep.subr.mxu0 0.0
    %85 = vmatpush1.msra.mxu0 0.0
    %86 = vmatprep.subr.mxu0 0.0
    %87 = vmatpush1.msra.mxu0 0.0
    %88 = vmatprep.subr.mxu0 0.0
    %89 = vmatpush1.msra.mxu0 0.0
    %90 = vmatprep.subr.mxu0 0.0
    %91 = vmatpush1.msra.mxu0 0.0
    %92 = vmatprep.subr.mxu0 0.0
    %93 = vmatpush1.msra.mxu0 0.0
    %94 = vmatprep.subr.mxu0 0.0
    %95 = vmatpush1.msra.mxu0 0.0
    %96 = vmatprep.subr.mxu0 0.0
    %97 = vmatpush1.msra.mxu0 0.0
    %98 = vmatprep.subr.mxu0 0.0
    %99 = vmatpush1.msra.mxu0 0.0
    %100 = vmatprep.subr.mxu0 0.0
    %101 = vmatpush1.msra.mxu0 0.0
    %102 = vmatprep.subr.mxu0 0.0
    %103 = vmatpush1.msra.mxu0 0.0
    %104 = vmatprep.subr.mxu0 0.0
    %105 = vmatpush1.msra.mxu0 0.0
    %106 = vmatprep.subr.mxu0 0.0
    %107 = vmatpush1.msra.mxu0 0.0
    %108 = vmatprep.subr.mxu0 0.0
    %109 = vmatpush1.msra.mxu0 0.0
    %110 = vmatprep.subr.mxu0 0.0
    %111 = vmatpush1.msra.mxu0 0.0
    %112 = vmatprep.subr.mxu0 0.0
    %113 = vmatpush1.msra.mxu0 0.0
    %114 = vmatprep.subr.mxu0 0.0
    %115 = vmatpush1.msra.mxu0 0.0
    %116 = vmatprep.subr.mxu0 0.0
    %117 = vmatpush1.msra.mxu0 0.0
    %118 = vmatprep.subr.mxu0 0.0
    %119 = vmatpush1.msra.mxu0 0.0
    %120 = vmatprep.subr.mxu0 0.0
    %121 = vmatpush1.msra.mxu0 0.0
    %122 = vmatprep.subr.mxu0 0.0
    %123 = vmatpush1.msra.mxu0 0.0
    %124 = vmatprep.subr.mxu0 0.0
    %125 = vmatpush1.msra.mxu0 0.0
    %126 = vmatprep.subr.mxu0 0.0
    %127 = vmatpush1.msra.mxu0 0.0
    %128 = vmatprep.subr.mxu0 0.0
    %129 = vmatpush1.msra.mxu0 0.0
    %130 = vmatprep.subr.mxu0 0.0
    %131 = vmatpush1.msra.mxu0 0.0
    %132 = vmatprep.subr.mxu0 0.0
    %133 = vmatpush1.msra.mxu0 0.0
    %134 = vmatprep.subr.mxu0 0.0
    %135 = vmatpush1.msra.mxu0 0.0
    %136 = vmatprep.mubr.f32.mxu0 0.0
    %137 = vmatmul.mubr.f32.gmra.mrb[0].mxu0 %v66
    %v138 = vpop.f32.mrb[0].mxu0
    %v139 = vadd.f32 0.0, %v138
    %v140 = vpop.f32.mrb[0].mxu0
    %141 = vdwg.mxu0
    %vm142 = vcmask 97280
    %v144 = vsel %vm142, %v62, 0
    %v147 = vsel %vm68, %v59, 0
    %149 = vmatprep.subr.mxu0 0.0
    %150 = vmatpush1.msra.mxu0 %v58
    %151 = vmatprep.subr.mxu0 0.0
    %152 = vmatpush1.msra.mxu0 %v147
    %153 = vmatprep.subr.mxu0 0.0
    %154 = vmatpush1.msra.mxu0 0.0
    %155 = vmatprep.subr.mxu0 0.0
    %156 = vmatpush1.msra.mxu0 0.0
    %157 = vmatprep.subr.mxu0 0.0
    %158 = vmatpush1.msra.mxu0 0.0
    %159 = vmatprep.subr.mxu0 0.0
    %160 = vmatpush1.msra.mxu0 0.0
    %161 = vmatprep.subr.mxu0 0.0
    %162 = vmatpush1.msra.mxu0 0.0
    %163 = vmatprep.subr.mxu0 0.0
    %164 = vmatpush1.msra.mxu0 0.0
    %165 = vmatprep.subr.mxu0 0.0
    %166 = vmatpush1.msra.mxu0 0.0
    %167 = vmatprep.subr.mxu0 0.0
    %168 = vmatpush1.msra.mxu0 0.0
    %169 = vmatprep.subr.mxu0 0.0
    %170 = vmatpush1.msra.mxu0 0.0
    %171 = vmatprep.subr.mxu0 0.0
    %172 = vmatpush1.msra.mxu0 0.0
    %173 = vmatprep.subr.mxu0 0.0
    %174 = vmatpush1.msra.mxu0 0.0
    %175 = vmatprep.subr.mxu0 0.0
    %176 = vmatpush1.msra.mxu0 0.0
    %177 = vmatprep.subr.mxu0 0.0
    %178 = vmatpush1.msra.mxu0 0.0
    %179 = vmatprep.subr.mxu0 0.0
    %180 = vmatpush1.msra.mxu0 0.0
    %181 = vmatprep.subr.mxu0 0.0
    %182 = vmatpush1.msra.mxu0 0.0
    %183 = vmatprep.subr.mxu0 0.0
    %184 = vmatpush1.msra.mxu0 0.0
    %185 = vmatprep.subr.mxu0 0.0
    %186 = vmatpush1.msra.mxu0 0.0
    %187 = vmatprep.subr.mxu0 0.0
    %188 = vmatpush1.msra.mxu0 0.0
    %189 = vmatprep.subr.mxu0 0.0
    %190 = vmatpush1.msra.mxu0 0.0
    %191 = vmatprep.subr.mxu0 0.0
    %192 = vmatpush1.msra.mxu0 0.0
    %193 = vmatprep.subr.mxu0 0.0
    %194 = vmatpush1.msra.mxu0 0.0
    %195 = vmatprep.subr.mxu0 0.0
    %196 = vmatpush1.msra.mxu0 0.0
    %197 = vmatprep.subr.mxu0 0.0
    %198 = vmatpush1.msra.mxu0 0.0
    %199 = vmatprep.subr.mxu0 0.0
    %200 = vmatpush1.msra.mxu0 0.0
    %201 = vmatprep.subr.mxu0 0.0
    %202 = vmatpush1.msra.mxu0 0.0
    %203 = vmatprep.subr.mxu0 0.0
    %204 = vmatpush1.msra.mxu0 0.0
    %205 = vmatprep.subr.mxu0 0.0
    %206 = vmatpush1.msra.mxu0 0.0
    %207 = vmatprep.subr.mxu0 0.0
    %208 = vmatpush1.msra.mxu0 0.0
    %209 = vmatprep.subr.mxu0 0.0
    %210 = vmatpush1.msra.mxu0 0.0
    %211 = vmatprep.subr.mxu0 0.0
    %212 = vmatpush1.msra.mxu0 0.0
    %213 = vmatprep.mubr.f32.mxu0 0.0
    %214 = vmatmul.mubr.f32.gmra.mrb[0].mxu0 %v144
    %v215 = vpop.f32.mrb[0].mxu0
    %v216 = vadd.f32 %v139, %v215
    %v217 = vpop.f32.mrb[0].mxu0
    %218 = vdwg.mxu0
    %v220 = vlaneseq
    %v221 = vshrl.u32 %v220, 7
    %v222 = vsub.s32 0, %v221
    %v223 = vrot.slane %v61, %v222
    %v225 = vadd.f32 %v216, %v223
    %v226 = vmax.f32 %v225, 0.0
    %v227 = vld [vmem:[%s5] sm:$0xff]
    %v228 = vld [vmem:[%s5 + $0x8] sm:$0xff]
    %v229 = vld [vmem:[%s5 + $0x10] sm:$0xff]
    %v230 = vld [vmem:[%s5 + $0x18] sm:$0xff]
    %v231 = vld [vmem:[%s6] sm:$0x1]
    %v233 = vlaneseq
    %v234 = vshrl.u32 %v233, 7
    %v235 = vsub.s32 0, %v234
    %v236 = vrot.slane %v231, %v235
    %vm238 = vcmask 261120
    %v240 = vsel %vm238, %v226, 0
    %242 = vmatprep.subr.mxu0 0.0
    %243 = vmatpush1.msra.mxu0 %v227
    %244 = vmatprep.subr.mxu0 0.0
    %245 = vmatpush1.msra.mxu0 %v228
    %246 = vmatprep.subr.mxu0 0.0
    %247 = vmatpush1.msra.mxu0 %v229
    %248 = vmatprep.subr.mxu0 0.0
    %249 = vmatpush1.msra.mxu0 %v230
    %250 = vmatprep.subr.mxu0 0.0
    %251 = vmatpush1.msra.mxu0 0.0
    %252 = vmatprep.subr.mxu0 0.0
    %253 = vmatpush1.msra.mxu0 0.0
    %254 = vmatprep.subr.mxu0 0.0
    %255 = vmatpush1.msra.mxu0 0.0
    %256 = vmatprep.subr.mxu0 0.0
    %257 = vmatpush1.msra.mxu0 0.0
    %258 = vmatprep.subr.mxu0 0.0
    %259 = vmatpush1.msra.mxu0 0.0
    %260 = vmatprep.subr.mxu0 0.0
    %261 = vmatpush1.msra.mxu0 0.0
    %262 = vmatprep.subr.mxu0 0.0
    %263 = vmatpush1.msra.mxu0 0.0
    %264 = vmatprep.subr.mxu0 0.0
    %265 = vmatpush1.msra.mxu0 0.0
    %266 = vmatprep.subr.mxu0 0.0
    %267 = vmatpush1.msra.mxu0 0.0
    %268 = vmatprep.subr.mxu0 0.0
    %269 = vmatpush1.msra.mxu0 0.0
    %270 = vmatprep.subr.mxu0 0.0
    %271 = vmatpush1.msra.mxu0 0.0
    %272 = vmatprep.subr.mxu0 0.0
    %273 = vmatpush1.msra.mxu0 0.0
    %274 = vmatprep.subr.mxu0 0.0
    %275 = vmatpush1.msra.mxu0 0.0
    %276 = vmatprep.subr.mxu0 0.0
    %277 = vmatpush1.msra.mxu0 0.0
    %278 = vmatprep.subr.mxu0 0.0
    %279 = vmatpush1.msra.mxu0 0.0
    %280 = vmatprep.subr.mxu0 0.0
    %281 = vmatpush1.msra.mxu0 0.0
    %282 = vmatprep.subr.mxu0 0.0
    %283 = vmatpush1.msra.mxu0 0.0
    %284 = vmatprep.subr.mxu0 0.0
    %285 = vmatpush1.msra.mxu0 0.0
    %286 = vmatprep.subr.mxu0 0.0
    %287 = vmatpush1.msra.mxu0 0.0
    %288 = vmatprep.subr.mxu0 0.0
    %289 = vmatpush1.msra.mxu0 0.0
    %290 = vmatprep.subr.mxu0 0.0
    %291 = vmatpush1.msra.mxu0 0.0
    %292 = vmatprep.subr.mxu0 0.0
    %293 = vmatpush1.msra.mxu0 0.0
    %294 = vmatprep.subr.mxu0 0.0
    %295 = vmatpush1.msra.mxu0 0.0
    %296 = vmatprep.subr.mxu0 0.0
    %297 = vmatpush1.msra.mxu0 0.0
    %298 = vmatprep.subr.mxu0 0.0
    %299 = vmatpush1.msra.mxu0 0.0
    %300 = vmatprep.subr.mxu0 0.0
    %301 = vmatpush1.msra.mxu0 0.0
    %302 = vmatprep.subr.mxu0 0.0
    %303 = vmatpush1.msra.mxu0 0.0
    %304 = vmatprep.subr.mxu0 0.0
    %305 = vmatpush1.msra.mxu0 0.0
    %306 = vmatprep.mubr.f32.mxu0 0.0
    %307 = vmatmul.mubr.f32.gmra.mrb[0].mxu0 %v240
    %v308 = vpop.f32.mrb[0].mxu0
    %v309 = vadd.f32 %v236, %v308
    %v310 = vpop.f32.mrb[0].mxu0
    %311 = vdwg.mxu0
    %v312 = vmax.f32 %v309, 0.0
    %v313 = vld [vmem:[#allocation5] sm:$0x1]
    %v314 = vld [vmem:[#allocation2] sm:$0x1]
    %v316 = vlaneseq
    %v317 = vshrl.u32 %v316, 7
    %v318 = vsub.s32 0, %v317
    %v319 = vrot.slane %v313, %v318
    %v321 = vmul.f32 %v312, %v319
    %v322 = vsel %vm238, %v321, 0.0
    %323 = vadd.xlane.f32.xlu0 %v322
    %v324 = vpop.xlane.xlu0 %323
    %v326 = vlaneseq
    %v327 = vshrl.u32 %v326, 7
    %v328 = vsub.s32 0, %v327
    %v329 = vrot.slane %v314, %v328
    %v331 = vadd.f32 %v324, %v329
    %vm332 = vcmask 7168
    %333 = vst.msk [vmem:[%s9] sm:$0xff] %vm332, %v331
    // Predicated region
    $region46: #{_critic_pallas.1} parent=1 // pred_check
      _
    $region47: #{_critic_pallas.1} parent=1 // pred_check_branch
      %335 = sbr.rel (0) target = $region49
    $region48: #{_critic_pallas.1} parent=1 // pred_region
      _
    $region49: #{_critic_pallas.1} parent=1 // pred_fallthru
      _
    // Predicated region
    $region50: #{_critic_pallas.1} parent=1 // pred_check
      _
    $region51: #{_critic_pallas.1} parent=1 // pred_check_branch
      %337 = sbr.rel (0) target = $region53
    $region52: #{_critic_pallas.1} parent=1 // pred_region
      _
    $region53: #{_critic_pallas.1} parent=1 // pred_fallthru
      _
    %338 = vsyncpa [#allocation4], 1
    %339 = vsyncpa [#allocation6], 1

</llo_original>
